<compile_context>
chip_gen: v7x
topology: tpu7x:2x2x1
jax: 0.10.0
libtpu: 0.0.40
codegen_flags: <defaults>
</compile_context>

<pallas_src>
import numpy as np
import jax
import jax.numpy as jnp
from jax import lax
from jax.experimental import pallas as pl
from jax.experimental.pallas import tpu as pltpu


def _sigmoid(x):
    # sigmoid(x) == 0.5*(tanh(x/2)+1): single EUP op, no divide, no exp overflow.
    return 0.5 * jnp.tanh(0.5 * x) + 0.5


def _build_spatial_conv_matrix(w_sp, H, W, kernel_size):
    """Fold the Conv2d(2, 1, k, padding=k//2, bias=False) into a dense (2*HW, HW) matrix.

    conv_flat[p] = sum_q cat_flat[q] * MT[q, p], where cat_flat = [mean_map, max_map]
    flattened to length 2*HW.  Built once on host (numpy); exact (each entry is a single
    weight copy, the zero-padding validity is encoded by absent entries).
    """
    KS = kernel_size
    pad = KS // 2
    HW = H * W
    w = np.asarray(w_sp, np.float32).reshape(2, KS, KS)
    ys, xs = np.meshgrid(np.arange(H), np.arange(W), indexing="ij")
    p = (ys * W + xs).reshape(-1)                                  # output flat index
    MT = np.zeros((2 * HW, HW), np.float32)
    for dy in range(-pad, pad + 1):
        for dx in range(-pad, pad + 1):
            yy, xx = ys + dy, xs + dx
            valid = ((yy >= 0) & (yy < H) & (xx >= 0) & (xx < W)).reshape(-1)
            q = (np.clip(yy, 0, H - 1) * W + np.clip(xx, 0, W - 1)).reshape(-1)
            for c in range(2):                                     # c=0: mean map, c=1: max map
                MT[c * HW + q[valid], p[valid]] += w[c, dy + pad, dx + pad]
    return MT


def _make_fused_kernel(Bblk, C, HW):
    inv_hw = np.float32(1.0 / HW)

    def kernel(x_ref, w1_ref, w2_ref, mt_ref, out_ref):
        x3 = x_ref[...]                               # (Bblk, C, HW) f32
        x2 = x3.reshape(Bblk * C, HW)                 # merge leading dims (lane dim unchanged)

        # ---------------- channel attention: pooling over HW ----------------
        # avg pool on the MXU (x @ ones), max pool on the XLU -> they overlap.
        ones_col = jnp.ones((HW, 1), jnp.float32)     # hoisted out of the batch loop
        avg_all = jnp.dot(x2, ones_col,
                          preferred_element_type=jnp.float32) * inv_hw    # (Bblk*C, 1)
        max_all = jnp.max(x2, axis=1, keepdims=True)                       # (Bblk*C, 1)

        w1 = w1_ref[...]                              # (Cr, C)
        w2 = w2_ref[...]                              # (C, Cr)

        xca_rows = []
        cat_rows = []
        for b in range(Bblk):                         # static, small
            # Fused fc: both pooled paths are the N=2 dimension of one matmul pair.
            pooled = jnp.concatenate(
                [avg_all[b * C:(b + 1) * C, :], max_all[b * C:(b + 1) * C, :]],
                axis=1)                                                         # (C, 2)
            h = jnp.maximum(
                jnp.dot(w1, pooled, preferred_element_type=jnp.float32), 0.0)   # (Cr, 2)
            y = jnp.dot(w2, h, preferred_element_type=jnp.float32)              # (C, 2)
            ca = _sigmoid(y[:, 0:1] + y[:, 1:2])                                 # (C, 1)

            xca = x2[b * C:(b + 1) * C, :] * ca                                  # (C, HW)
            xca_rows.append(xca)          # stays live in vregs; no HBM/VMEM round trip

            # Spatial-attention inputs: channel-wise mean & max maps, lane-dense flat.
            mean_map = jnp.mean(xca, axis=0, keepdims=True)                      # (1, HW)
            max_map = jnp.max(xca, axis=0, keepdims=True)                        # (1, HW)
            cat_rows.append(jnp.concatenate([mean_map, max_map], axis=1))        # (1, 2*HW)

        # ------- spatial attention: ONE MXU matmul against the folded conv matrix -------
        cat_all = jnp.concatenate(cat_rows, axis=0)                              # (Bblk, 2*HW)
        conv = jnp.dot(cat_all, mt_ref[...],
                       preferred_element_type=jnp.float32)                       # (Bblk, HW)
        sa = _sigmoid(conv)                                                      # (Bblk, HW)

        # ---------------- single lane-dense store of the final result ----------------
        for b in range(Bblk):
            out_ref[b] = xca_rows[b] * sa[b:b + 1, :]                            # (C, HW)

    return kernel


def make_attention_module(w1, w2, w_sp, H, W, *, kernel_size=7, batch_block=None):
    """One-time setup for the CBAM AttentionModule forward.

    w1: (C//r, C)   Conv2d(C, C//r, 1, bias=False).weight squeezed
    w2: (C, C//r)   Conv2d(C//r, C, 1, bias=False).weight squeezed
    w_sp: (1, 2, k, k)  Conv2d(2, 1, k, padding=k//2, bias=False).weight
    batch_block: batch elements per grid step (default: whole batch in one step —
                 best on single-TC v5e/v6e; use ceil(B/2) on v7x to use both TCs).
    Returns a jitted fn(x[B,C,H,W]) -> [B,C,H,W].
    """
    Cr, C = w1.shape
    assert w2.shape == (C, Cr)
    HW = H * W
    # Hoisted, one-time host-side preprocessing (conv weights x padding validity).
    mt = jnp.asarray(_build_spatial_conv_matrix(w_sp, H, W, kernel_size))   # (2*HW, HW)
    w1 = jnp.asarray(w1, jnp.float32)
    w2 = jnp.asarray(w2, jnp.float32)

    def forward(x):
        B = x.shape[0]
        assert x.shape[1:] == (C, H, W)
        Bblk = B if batch_block is None else int(batch_block)
        assert B % Bblk == 0, "batch_block must divide the batch size"
        x_flat = x.astype(jnp.float32).reshape(B, C, HW)

        kernel = _make_fused_kernel(Bblk, C, HW)
        out_flat = pl.pallas_call(
            kernel,
            grid=(B // Bblk,),
            in_specs=[
                pl.BlockSpec((Bblk, C, HW), lambda i: (i, 0, 0)),   # x (batch block)
                pl.BlockSpec((Cr, C), lambda i: (0, 0)),            # fc1 weight (resident)
                pl.BlockSpec((C, Cr), lambda i: (0, 0)),            # fc2 weight (resident)
                pl.BlockSpec((2 * HW, HW), lambda i: (0, 0)),       # folded conv matrix
            ],
            out_specs=pl.BlockSpec((Bblk, C, HW), lambda i: (i, 0, 0)),
            out_shape=jax.ShapeDtypeStruct((B, C, HW), jnp.float32),
            compiler_params=pltpu.CompilerParams(
                dimension_semantics=("parallel",)),                 # 2x on v7x dual-TC
        )(x_flat, w1, w2, mt)
        return out_flat.reshape(B, C, H, W)

    return jax.jit(forward)


def attention_reference(x, w1, w2, w_sp, kernel_size=7):
    """Pure-JAX reference matching the PyTorch module semantics."""
    pad = kernel_size // 2
    avg = jnp.mean(x, axis=(2, 3))
    mx = jnp.max(x, axis=(2, 3))

    def fc(v):
        h = jnp.maximum(jnp.dot(v, w1.T, precision=lax.Precision.HIGHEST), 0.0)
        return jnp.dot(h, w2.T, precision=lax.Precision.HIGHEST)

    ca = jax.nn.sigmoid(fc(avg) + fc(mx))[:, :, None, None]
    x1 = x * ca
    avg_s = jnp.mean(x1, axis=1, keepdims=True)
    max_s = jnp.max(x1, axis=1, keepdims=True)
    cat = jnp.concatenate([avg_s, max_s], axis=1)
    conv = lax.conv_general_dilated(
        cat, w_sp, window_strides=(1, 1),
        padding=((pad, pad), (pad, pad)),
        dimension_numbers=("NCHW", "OIHW", "NCHW"),
        precision=lax.Precision.HIGHEST)
    sa = jax.nn.sigmoid(conv)
    return x1 * sa


if __name__ == "__main__":
    B, C, H, W = 2, 32, 16, 16
    reduction_ratio = 16
    kernel_size = 7
    Cr = C // reduction_ratio

    key = jax.random.PRNGKey(0)
    kx, k1, k2, k3 = jax.random.split(key, 4)
    x = jax.random.normal(kx, (B, C, H, W), jnp.float32)
    # Conv2d(C, C//r, 1, bias=False).weight squeezed -> (Cr, C)
    w1 = 0.2 * jax.random.normal(k1, (Cr, C), jnp.float32)
    # Conv2d(C//r, C, 1, bias=False).weight squeezed -> (C, Cr)
    w2 = 0.2 * jax.random.normal(k2, (C, Cr), jnp.float32)
    # Conv2d(2, 1, 7, padding=3, bias=False).weight -> (1, 2, 7, 7)
    w_sp = 0.1 * jax.random.normal(k3, (1, 2, kernel_size, kernel_size), jnp.float32)

    attn = make_attention_module(w1, w2, w_sp, H, W, kernel_size=kernel_size)
    out = jax.block_until_ready(attn(x))

    ref = attention_reference(x, w1, w2, w_sp, kernel_size)
    # Tolerance leaves margin for MXU f32 pass differences vs. the HIGHEST-precision ref.
    np.testing.assert_allclose(np.asarray(out), np.asarray(ref), atol=2e-3, rtol=2e-3)
    print("KERNEL_OK")
</pallas_src>

<mosaic_0001>
module attributes {stable_mosaic.version = 11 : i64} {
  func.func @kernel(%arg0: i32, %arg1: memref<2x32x256xf32, #tpu.memory_space<vmem>>, %arg2: memref<2x32xf32, #tpu.memory_space<vmem>>, %arg3: memref<32x2xf32, #tpu.memory_space<vmem>>, %arg4: memref<512x256xf32, #tpu.memory_space<vmem>>, %arg5: memref<2x32x256xf32, #tpu.memory_space<vmem>>) attributes {dimension_semantics = [#tpu.dimension_semantics<parallel>], iteration_bounds = array<i64: 1>, scalar_prefetch = 0 : i64, scratch_operands = 0 : i64, tpu.core_type = #tpu.core_type<tc>, window_params = [{transform_indices = @transform_0, window_bounds = array<i64: 2, 32, 256>}, {pipeline_mode = #tpu.pipeline_mode<synchronous>, transform_indices = @transform_1, window_bounds = array<i64: 2, 32>}, {pipeline_mode = #tpu.pipeline_mode<synchronous>, transform_indices = @transform_2, window_bounds = array<i64: 32, 2>}, {pipeline_mode = #tpu.pipeline_mode<synchronous>, transform_indices = @transform_3, window_bounds = array<i64: 512, 256>}, {transform_indices = @transform_4, window_bounds = array<i64: 2, 32, 256>}]} {
    %c0 = arith.constant 0 : index
    %c0_0 = arith.constant 0 : index
    %c0_1 = arith.constant 0 : index
    %0 = vector.load %arg1[%c0, %c0_0, %c0_1] : memref<2x32x256xf32, #tpu.memory_space<vmem>>, vector<2x32x256xf32>
    %1 = vector.shape_cast %0 : vector<2x32x256xf32> to vector<64x256xf32>
    %cst = arith.constant 1.000000e+00 : f32
    %2 = vector.broadcast %cst : f32 to vector<256x1xf32>
    %cst_2 = arith.constant dense<0.000000e+00> : vector<64x1xf32>
    %3 = tpu.matmul %1, %2, %cst_2 {dimension_numbers = #tpu.dot_dimension_numbers<[1], [0], [0], [1], [0, 0, 1, 1], [], []>} : vector<64x256xf32>, vector<256x1xf32>, vector<64x1xf32> -> vector<64x1xf32>
    %cst_3 = arith.constant 3.906250e-03 : f32
    %4 = vector.broadcast %cst_3 : f32 to vector<64x1xf32>
    %5 = arith.mulf %3, %4 : vector<64x1xf32>
    %cst_4 = arith.constant dense<0xFF800000> : vector<64xf32>
    %6 = vector.multi_reduction <maximumf>, %1, %cst_4 [1] : vector<64x256xf32> to vector<64xf32>
    %7 = vector.shape_cast %6 : vector<64xf32> to vector<64x1xf32>
    %c0_5 = arith.constant 0 : index
    %c0_6 = arith.constant 0 : index
    %8 = vector.load %arg2[%c0_5, %c0_6] : memref<2x32xf32, #tpu.memory_space<vmem>>, vector<2x32xf32>
    %c0_7 = arith.constant 0 : index
    %c0_8 = arith.constant 0 : index
    %9 = vector.load %arg3[%c0_7, %c0_8] : memref<32x2xf32, #tpu.memory_space<vmem>>, vector<32x2xf32>
    %10 = vector.extract_strided_slice %5 {offsets = [0, 0], sizes = [32, 1], strides = [1, 1]} : vector<64x1xf32> to vector<32x1xf32>
    %11 = vector.extract_strided_slice %7 {offsets = [0, 0], sizes = [32, 1], strides = [1, 1]} : vector<64x1xf32> to vector<32x1xf32>
    %12 = tpu.concatenate %10, %11 in 1 : vector<32x1xf32>, vector<32x1xf32> -> vector<32x2xf32>
    %cst_9 = arith.constant dense<0.000000e+00> : vector<2x2xf32>
    %13 = tpu.matmul %8, %12, %cst_9 {dimension_numbers = #tpu.dot_dimension_numbers<[1], [0], [0], [1], [0, 0, 1, 1], [], []>} : vector<2x32xf32>, vector<32x2xf32>, vector<2x2xf32> -> vector<2x2xf32>
    %cst_10 = arith.constant 0.000000e+00 : f32
    %14 = vector.broadcast %cst_10 : f32 to vector<2x2xf32>
    %15 = arith.maximumf %13, %14 : vector<2x2xf32>
    %cst_11 = arith.constant dense<0.000000e+00> : vector<32x2xf32>
    %16 = tpu.matmul %9, %15, %cst_11 {dimension_numbers = #tpu.dot_dimension_numbers<[1], [0], [0], [1], [0, 0, 1, 1], [], []>} : vector<32x2xf32>, vector<2x2xf32>, vector<32x2xf32> -> vector<32x2xf32>
    %17 = vector.extract_strided_slice %16 {offsets = [0, 0], sizes = [32, 1], strides = [1, 1]} : vector<32x2xf32> to vector<32x1xf32>
    %18 = vector.extract_strided_slice %16 {offsets = [0, 1], sizes = [32, 1], strides = [1, 1]} : vector<32x2xf32> to vector<32x1xf32>
    %19 = arith.addf %17, %18 : vector<32x1xf32>
    %cst_12 = arith.constant 5.000000e-01 : f32
    %20 = vector.broadcast %cst_12 : f32 to vector<32x1xf32>
    %21 = arith.mulf %20, %19 : vector<32x1xf32>
    %22 = math.tanh %21 : vector<32x1xf32>
    %cst_13 = arith.constant 5.000000e-01 : f32
    %23 = vector.broadcast %cst_13 : f32 to vector<32x1xf32>
    %24 = arith.mulf %23, %22 : vector<32x1xf32>
    %cst_14 = arith.constant 5.000000e-01 : f32
    %25 = vector.broadcast %cst_14 : f32 to vector<32x1xf32>
    %26 = arith.addf %24, %25 : vector<32x1xf32>
    %27 = vector.extract_strided_slice %1 {offsets = [0, 0], sizes = [32, 256], strides = [1, 1]} : vector<64x256xf32> to vector<32x256xf32>
    %28 = vector.broadcast %26 : vector<32x1xf32> to vector<32x256xf32>
    %29 = arith.mulf %27, %28 : vector<32x256xf32>
    %cst_15 = arith.constant dense<0.000000e+00> : vector<256xf32>
    %30 = vector.multi_reduction <add>, %29, %cst_15 [0] : vector<32x256xf32> to vector<256xf32>
    %31 = vector.shape_cast %30 : vector<256xf32> to vector<1x256xf32>
    %cst_16 = arith.constant 3.200000e+01 : f32
    %32 = vector.broadcast %cst_16 : f32 to vector<1x256xf32>
    %33 = arith.divf %31, %32 : vector<1x256xf32>
    %cst_17 = arith.constant dense<0xFF800000> : vector<256xf32>
    %34 = vector.multi_reduction <maximumf>, %29, %cst_17 [0] : vector<32x256xf32> to vector<256xf32>
    %35 = vector.shape_cast %34 : vector<256xf32> to vector<1x256xf32>
    %36 = tpu.concatenate %33, %35 in 1 : vector<1x256xf32>, vector<1x256xf32> -> vector<1x512xf32>
    %37 = vector.extract_strided_slice %5 {offsets = [32, 0], sizes = [32, 1], strides = [1, 1]} : vector<64x1xf32> to vector<32x1xf32>
    %38 = vector.extract_strided_slice %7 {offsets = [32, 0], sizes = [32, 1], strides = [1, 1]} : vector<64x1xf32> to vector<32x1xf32>
    %39 = tpu.concatenate %37, %38 in 1 : vector<32x1xf32>, vector<32x1xf32> -> vector<32x2xf32>
    %cst_18 = arith.constant dense<0.000000e+00> : vector<2x2xf32>
    %40 = tpu.matmul %8, %39, %cst_18 {dimension_numbers = #tpu.dot_dimension_numbers<[1], [0], [0], [1], [0, 0, 1, 1], [], []>} : vector<2x32xf32>, vector<32x2xf32>, vector<2x2xf32> -> vector<2x2xf32>
    %cst_19 = arith.constant 0.000000e+00 : f32
    %41 = vector.broadcast %cst_19 : f32 to vector<2x2xf32>
    %42 = arith.maximumf %40, %41 : vector<2x2xf32>
    %cst_20 = arith.constant dense<0.000000e+00> : vector<32x2xf32>
    %43 = tpu.matmul %9, %42, %cst_20 {dimension_numbers = #tpu.dot_dimension_numbers<[1], [0], [0], [1], [0, 0, 1, 1], [], []>} : vector<32x2xf32>, vector<2x2xf32>, vector<32x2xf32> -> vector<32x2xf32>
    %44 = vector.extract_strided_slice %43 {offsets = [0, 0], sizes = [32, 1], strides = [1, 1]} : vector<32x2xf32> to vector<32x1xf32>
    %45 = vector.extract_strided_slice %43 {offsets = [0, 1], sizes = [32, 1], strides = [1, 1]} : vector<32x2xf32> to vector<32x1xf32>
    %46 = arith.addf %44, %45 : vector<32x1xf32>
    %cst_21 = arith.constant 5.000000e-01 : f32
    %47 = vector.broadcast %cst_21 : f32 to vector<32x1xf32>
    %48 = arith.mulf %47, %46 : vector<32x1xf32>
    %49 = math.tanh %48 : vector<32x1xf32>
    %cst_22 = arith.constant 5.000000e-01 : f32
    %50 = vector.broadcast %cst_22 : f32 to vector<32x1xf32>
    %51 = arith.mulf %50, %49 : vector<32x1xf32>
    %cst_23 = arith.constant 5.000000e-01 : f32
    %52 = vector.broadcast %cst_23 : f32 to vector<32x1xf32>
    %53 = arith.addf %51, %52 : vector<32x1xf32>
    %54 = vector.extract_strided_slice %1 {offsets = [32, 0], sizes = [32, 256], strides = [1, 1]} : vector<64x256xf32> to vector<32x256xf32>
    %55 = vector.broadcast %53 : vector<32x1xf32> to vector<32x256xf32>
    %56 = arith.mulf %54, %55 : vector<32x256xf32>
    %cst_24 = arith.constant dense<0.000000e+00> : vector<256xf32>
    %57 = vector.multi_reduction <add>, %56, %cst_24 [0] : vector<32x256xf32> to vector<256xf32>
    %58 = vector.shape_cast %57 : vector<256xf32> to vector<1x256xf32>
    %cst_25 = arith.constant 3.200000e+01 : f32
    %59 = vector.broadcast %cst_25 : f32 to vector<1x256xf32>
    %60 = arith.divf %58, %59 : vector<1x256xf32>
    %cst_26 = arith.constant dense<0xFF800000> : vector<256xf32>
    %61 = vector.multi_reduction <maximumf>, %56, %cst_26 [0] : vector<32x256xf32> to vector<256xf32>
    %62 = vector.shape_cast %61 : vector<256xf32> to vector<1x256xf32>
    %63 = tpu.concatenate %60, %62 in 1 : vector<1x256xf32>, vector<1x256xf32> -> vector<1x512xf32>
    %64 = tpu.concatenate %36, %63 in 0 : vector<1x512xf32>, vector<1x512xf32> -> vector<2x512xf32>
    %c0_27 = arith.constant 0 : index
    %c0_28 = arith.constant 0 : index
    %65 = vector.load %arg4[%c0_27, %c0_28] : memref<512x256xf32, #tpu.memory_space<vmem>>, vector<512x256xf32>
    %cst_29 = arith.constant dense<0.000000e+00> : vector<2x256xf32>
    %66 = tpu.matmul %64, %65, %cst_29 {dimension_numbers = #tpu.dot_dimension_numbers<[1], [0], [0], [1], [0, 0, 1, 1], [], []>} : vector<2x512xf32>, vector<512x256xf32>, vector<2x256xf32> -> vector<2x256xf32>
    %cst_30 = arith.constant 5.000000e-01 : f32
    %67 = vector.broadcast %cst_30 : f32 to vector<2x256xf32>
    %68 = arith.mulf %67, %66 : vector<2x256xf32>
    %69 = math.tanh %68 : vector<2x256xf32>
    %cst_31 = arith.constant 5.000000e-01 : f32
    %70 = vector.broadcast %cst_31 : f32 to vector<2x256xf32>
    %71 = arith.mulf %70, %69 : vector<2x256xf32>
    %cst_32 = arith.constant 5.000000e-01 : f32
    %72 = vector.broadcast %cst_32 : f32 to vector<2x256xf32>
    %73 = arith.addf %71, %72 : vector<2x256xf32>
    %74 = vector.extract_strided_slice %73 {offsets = [0, 0], sizes = [1, 256], strides = [1, 1]} : vector<2x256xf32> to vector<1x256xf32>
    %75 = vector.broadcast %74 : vector<1x256xf32> to vector<32x256xf32>
    %76 = arith.mulf %29, %75 : vector<32x256xf32>
    %c0_33 = arith.constant 0 : index
    %c0_34 = arith.constant 0 : index
    %c0_35 = arith.constant 0 : index
    %77 = vector.load %arg5[%c0_33, %c0_34, %c0_35] : memref<2x32x256xf32, #tpu.memory_space<vmem>>, vector<1x32x256xf32>
    %78 = vector.shape_cast %77 : vector<1x32x256xf32> to vector<32x256xf32>
    %79 = vector.shape_cast %76 : vector<32x256xf32> to vector<1x32x256xf32>
    tpu.vector_store %arg5[%c0_33, %c0_34, %c0_35], %79 {strides = array<i32>} : memref<2x32x256xf32, #tpu.memory_space<vmem>>, vector<1x32x256xf32>,
    %80 = vector.extract_strided_slice %73 {offsets = [1, 0], sizes = [1, 256], strides = [1, 1]} : vector<2x256xf32> to vector<1x256xf32>
    %81 = vector.broadcast %80 : vector<1x256xf32> to vector<32x256xf32>
    %82 = arith.mulf %56, %81 : vector<32x256xf32>
    %c1 = arith.constant 1 : index
    %c0_36 = arith.constant 0 : index
    %c0_37 = arith.constant 0 : index
    %83 = vector.load %arg5[%c1, %c0_36, %c0_37] : memref<2x32x256xf32, #tpu.memory_space<vmem>>, vector<1x32x256xf32>
    %84 = vector.shape_cast %83 : vector<1x32x256xf32> to vector<32x256xf32>
    %85 = vector.shape_cast %82 : vector<32x256xf32> to vector<1x32x256xf32>
    tpu.vector_store %arg5[%c1, %c0_36, %c0_37], %85 {strides = array<i32>} : memref<2x32x256xf32, #tpu.memory_space<vmem>>, vector<1x32x256xf32>,
    return
  }
  func.func @transform_0(%arg0: i32) -> (i32, i32, i32) {
    %c0_i32 = arith.constant 0 : i32
    %c0_i32_0 = arith.constant 0 : i32
    %c0_i32_1 = arith.constant 0 : i32
    return %arg0, %c0_i32, %c0_i32_0 : i32, i32, i32
  }
  func.func @transform_1(%arg0: i32) -> (i32, i32) {
    %c0_i32 = arith.constant 0 : i32
    %c0_i32_0 = arith.constant 0 : i32
    %c0_i32_1 = arith.constant 0 : i32
    return %c0_i32, %c0_i32_0 : i32, i32
  }
  func.func @transform_2(%arg0: i32) -> (i32, i32) {
    %c0_i32 = arith.constant 0 : i32
    %c0_i32_0 = arith.constant 0 : i32
    %c0_i32_1 = arith.constant 0 : i32
    return %c0_i32, %c0_i32_0 : i32, i32
  }
  func.func @transform_3(%arg0: i32) -> (i32, i32) {
    %c0_i32 = arith.constant 0 : i32
    %c0_i32_0 = arith.constant 0 : i32
    %c0_i32_1 = arith.constant 0 : i32
    return %c0_i32, %c0_i32_0 : i32, i32
  }
  func.func @transform_4(%arg0: i32) -> (i32, i32, i32) {
    %c0_i32 = arith.constant 0 : i32
    %c0_i32_0 = arith.constant 0 : i32
    %c0_i32_1 = arith.constant 0 : i32
    return %arg0, %c0_i32, %c0_i32_0 : i32, i32, i32
  }
}

</mosaic_0001>

<llo_original>
// kernel: forward.1
$region0: #{forward.1}
  #allocation0 [shape = 'u32[]', space=smem, size = 0x4, offset = 0x4, fixed_abs, tag = 'smem constant byte address 0x4 - core index']
  #allocation1 [shape = 'u32[144,128]{1,0:T(1,128)}', space=vmem, size = 0x12000, scoped, tag = 'internal scratch']
  %s0 = inlined_call_operand.vmem [shape: f32[2,32,256], index: 0, kind: input, shape index: {}]
  %s1 = inlined_call_operand.vmem [shape: f32[2,32], index: 1, kind: input, shape index: {}]
  %s2 = inlined_call_operand.vmem [shape: f32[32,2], index: 2, kind: input, shape index: {}]
  %s3 = inlined_call_operand.hbm [shape: f32[512,256], index: 3, kind: input, shape index: {}]
  %s4 = inlined_call_operand.vmem [shape: f32[2,32,256], index: 4, kind: output, shape index: {}]
  %s5 = sld [smem:[#allocation0]]
  $region30: #{forward.1} parent=0
    _
  %s7 = ssub.s32 1, %s5
  %s8 = scalar_select 0, %s7, %s5
  $region1: #{forward.1} parent=0
    #allocation2 [shape = 'u8[524288]{0}', space=vmem, size = 0x80000, scoped, tag = 'input window, operand 3, single buffered']
    #allocation3 [shape = 's32[1]{0}', space=sflag, size = 0x4, scoped, tag = 'scoped memory for forward.1']
    %9 = vsyncpa [#allocation3], 0
    // Predicated region
    $region2: #{forward.1} parent=1 // pred_check
      _
    $region3: #{forward.1} parent=1 // pred_check_branch
      %11 = sbr.rel (0) target = $region5
    $region4: #{forward.1} parent=1 // pred_region
      _
    $region5: #{forward.1} parent=1 // pred_fallthru
      _
    // Predicated region
    $region6: #{forward.1} parent=1 // pred_check
      _
    $region7: #{forward.1} parent=1 // pred_check_branch
      %13 = sbr.rel (0) target = $region9
    $region8: #{forward.1} parent=1 // pred_region
      _
    $region9: #{forward.1} parent=1 // pred_fallthru
      _
    // Predicated region
    $region10: #{forward.1} parent=1 // pred_check
      _
    $region11: #{forward.1} parent=1 // pred_check_branch
      %15 = sbr.rel (0) target = $region13
    $region12: #{forward.1} parent=1 // pred_region
      _
    $region13: #{forward.1} parent=1 // pred_fallthru
      _
    // Predicated region
    $region14: #{forward.1} parent=1 // pred_check
      _
    $region15: #{forward.1} parent=1 // pred_check_branch
      %17 = sbr.rel (0) target = $region17
    $region16: #{forward.1} parent=1 // pred_region
      %s19 = ssub.s32 16384, 16384
      %20 = vsyncadd [#allocation3], %s19
      %s21 = sshll.u32 [#allocation2], 4
      %s22 = int_to_ptr.vmem [resolvable:$true] %s21
      %27 = dma.hbm_to_vmem [thread:$0]  %s3, 16384, %s22, [#allocation3], 256, 256, 16
    $region17: #{forward.1} parent=1 // pred_fallthru
      _
    // Predicated region
    $region18: #{forward.1} parent=1 // pred_check
      _
    $region19: #{forward.1} parent=1 // pred_check_branch
      %29 = sbr.rel (0) target = $region21
    $region20: #{forward.1} parent=1 // pred_region
      %30 = dma.done [#allocation3], 16384
    $region21: #{forward.1} parent=1 // pred_fallthru
      _
    %v31 = vld [vmem:[%s0] sm:$0xff]
    %v32 = vld [vmem:[%s0 + $0x8] sm:$0xff]
    %v33 = vld [vmem:[%s0 + $0x10] sm:$0xff]
    %v34 = vld [vmem:[%s0 + $0x18] sm:$0xff]
    %v35 = vld [vmem:[%s0 + $0x20] sm:$0xff]
    %v36 = vld [vmem:[%s0 + $0x28] sm:$0xff]
    %v37 = vld [vmem:[%s0 + $0x30] sm:$0xff]
    %v38 = vld [vmem:[%s0 + $0x38] sm:$0xff]
    %v39 = vld [vmem:[%s0 + $0x40] sm:$0xff]
    %v40 = vld [vmem:[%s0 + $0x48] sm:$0xff]
    %v41 = vld [vmem:[%s0 + $0x50] sm:$0xff]
    %v42 = vld [vmem:[%s0 + $0x58] sm:$0xff]
    %v43 = vld [vmem:[%s0 + $0x60] sm:$0xff]
    %v44 = vld [vmem:[%s0 + $0x68] sm:$0xff]
    %v45 = vld [vmem:[%s0 + $0x70] sm:$0xff]
    %v46 = vld [vmem:[%s0 + $0x78] sm:$0xff]
    %47 = vmatprep.subr.mxu0 0.0
    %48 = vmatpush1.msra.mxu0 1.0
    %49 = vmatprep.subr.mxu0 0.0
    %50 = vmatpush1.msra.mxu0 1.0
    %51 = vmatprep.subr.mxu0 0.0
    %52 = vmatpush1.msra.mxu0 1.0
    %53 = vmatprep.subr.mxu0 0.0
    %54 = vmatpush1.msra.mxu0 1.0
    %55 = vmatprep.subr.mxu0 0.0
    %56 = vmatpush1.msra.mxu0 1.0
    %57 = vmatprep.subr.mxu0 0.0
    %58 = vmatpush1.msra.mxu0 1.0
    %59 = vmatprep.subr.mxu0 0.0
    %60 = vmatpush1.msra.mxu0 1.0
    %61 = vmatprep.subr.mxu0 0.0
    %62 = vmatpush1.msra.mxu0 1.0
    %63 = vmatprep.subr.mxu0 0.0
    %64 = vmatpush1.msra.mxu0 1.0
    %65 = vmatprep.subr.mxu0 0.0
    %66 = vmatpush1.msra.mxu0 1.0
    %67 = vmatprep.subr.mxu0 0.0
    %68 = vmatpush1.msra.mxu0 1.0
    %69 = vmatprep.subr.mxu0 0.0
    %70 = vmatpush1.msra.mxu0 1.0
    %71 = vmatprep.subr.mxu0 0.0
    %72 = vmatpush1.msra.mxu0 1.0
    %73 = vmatprep.subr.mxu0 0.0
    %74 = vmatpush1.msra.mxu0 1.0
    %75 = vmatprep.subr.mxu0 0.0
    %76 = vmatpush1.msra.mxu0 1.0
    %77 = vmatprep.subr.mxu0 0.0
    %78 = vmatpush1.msra.mxu0 1.0
    %79 = vmatprep.subr.mxu0 0.0
    %80 = vmatpush1.msra.mxu0 1.0
    %81 = vmatprep.subr.mxu0 0.0
    %82 = vmatpush1.msra.mxu0 1.0
    %83 = vmatprep.subr.mxu0 0.0
    %84 = vmatpush1.msra.mxu0 1.0
    %85 = vmatprep.subr.mxu0 0.0
    %86 = vmatpush1.msra.mxu0 1.0
    %87 = vmatprep.subr.mxu0 0.0
    %88 = vmatpush1.msra.mxu0 1.0
    %89 = vmatprep.subr.mxu0 0.0
    %90 = vmatpush1.msra.mxu0 1.0
    %91 = vmatprep.subr.mxu0 0.0
    %92 = vmatpush1.msra.mxu0 1.0
    %93 = vmatprep.subr.mxu0 0.0
    %94 = vmatpush1.msra.mxu0 1.0
    %95 = vmatprep.subr.mxu0 0.0
    %96 = vmatpush1.msra.mxu0 1.0
    %97 = vmatprep.subr.mxu0 0.0
    %98 = vmatpush1.msra.mxu0 1.0
    %99 = vmatprep.subr.mxu0 0.0
    %100 = vmatpush1.msra.mxu0 1.0
    %101 = vmatprep.subr.mxu0 0.0
    %102 = vmatpush1.msra.mxu0 1.0
    %103 = vmatprep.subr.mxu0 0.0
    %104 = vmatpush1.msra.mxu0 1.0
    %105 = vmatprep.subr.mxu0 0.0
    %106 = vmatpush1.msra.mxu0 1.0
    %107 = vmatprep.subr.mxu0 0.0
    %108 = vmatpush1.msra.mxu0 1.0
    %109 = vmatprep.subr.mxu0 0.0
    %110 = vmatpush1.msra.mxu0 1.0
    %111 = vmatprep.mubr.f32.mxu0 %v32
    %112 = vmatmul.mubr.f32.gmra.mrb[0].mxu0 %v31
    %v113 = vpop.f32.mrb[0].mxu0
    %v114 = vadd.f32 0.0, %v113
    %v115 = vpop.f32.mrb[0].mxu0
    %116 = vmatprep.mubr.f32.mxu0 %v34
    %117 = vmatmul.mubr.f32.gmra.mrb[0].mxu0 %v33
    %v118 = vpop.f32.mrb[0].mxu0
    %v119 = vadd.f32 0.0, %v118
    %v120 = vpop.f32.mrb[0].mxu0
    %121 = vmatprep.mubr.f32.mxu0 %v36
    %122 = vmatmul.mubr.f32.gmra.mrb[0].mxu0 %v35
    %v123 = vpop.f32.mrb[0].mxu0
    %v124 = vadd.f32 0.0, %v123
    %v125 = vpop.f32.mrb[0].mxu0
    %126 = vmatprep.mubr.f32.mxu0 %v38
    %127 = vmatmul.mubr.f32.gmra.mrb[0].mxu0 %v37
    %v128 = vpop.f32.mrb[0].mxu0
    %v129 = vadd.f32 0.0, %v128
    %v130 = vpop.f32.mrb[0].mxu0
    %131 = vmatprep.mubr.f32.mxu0 %v40
    %132 = vmatmul.mubr.f32.gmra.mrb[0].mxu0 %v39
    %v133 = vpop.f32.mrb[0].mxu0
    %v134 = vadd.f32 0.0, %v133
    %v135 = vpop.f32.mrb[0].mxu0
    %136 = vmatprep.mubr.f32.mxu0 %v42
    %137 = vmatmul.mubr.f32.gmra.mrb[0].mxu0 %v41
    %v138 = vpop.f32.mrb[0].mxu0
    %v139 = vadd.f32 0.0, %v138
    %v140 = vpop.f32.mrb[0].mxu0
    %141 = vmatprep.mubr.f32.mxu0 %v44
    %142 = vmatmul.mubr.f32.gmra.mrb[0].mxu0 %v43
    %v143 = vpop.f32.mrb[0].mxu0
    %v144 = vadd.f32 0.0, %v143
    %v145 = vpop.f32.mrb[0].mxu0
    %146 = vmatprep.mubr.f32.mxu0 %v46
    %147 = vmatmul.mubr.f32.gmra.mrb[0].mxu0 %v45
    %v148 = vpop.f32.mrb[0].mxu0
    %v149 = vadd.f32 0.0, %v148
    %v150 = vpop.f32.mrb[0].mxu0
    %151 = vdwg.mxu0
    %v152 = vmul.f32 %v114, 0.00390625
    %v153 = vmul.f32 %v119, 0.00390625
    %v154 = vmul.f32 %v124, 0.00390625
    %v155 = vmul.f32 %v129, 0.00390625
    %v156 = vmul.f32 %v134, 0.00390625
    %v157 = vmul.f32 %v139, 0.00390625
    %v158 = vmul.f32 %v144, 0.00390625
    %v159 = vmul.f32 %v149, 0.00390625
    %v160 = vmax.f32 %v31, %v32
    %161 = vmax.xlane.f32.xlu0 %v160
    %v162 = vpop.xlane.xlu0 %161
    %v163 = vmax.f32 %v33, %v34
    %164 = vmax.xlane.f32.xlu0 %v163
    %v165 = vpop.xlane.xlu0 %164
    %v166 = vmax.f32 %v35, %v36
    %167 = vmax.xlane.f32.xlu0 %v166
    %v168 = vpop.xlane.xlu0 %167
    %v169 = vmax.f32 %v37, %v38
    %170 = vmax.xlane.f32.xlu0 %v169
    %v171 = vpop.xlane.xlu0 %170
    %v172 = vmax.f32 %v39, %v40
    %173 = vmax.xlane.f32.xlu0 %v172
    %v174 = vpop.xlane.xlu0 %173
    %v175 = vmax.f32 %v41, %v42
    %176 = vmax.xlane.f32.xlu0 %v175
    %v177 = vpop.xlane.xlu0 %176
    %v178 = vmax.f32 %v43, %v44
    %179 = vmax.xlane.f32.xlu0 %v178
    %v180 = vpop.xlane.xlu0 %179
    %v181 = vmax.f32 %v45, %v46
    %182 = vmax.xlane.f32.xlu0 %v181
    %v183 = vpop.xlane.xlu0 %182
    %v184 = vld [vmem:[%s1] sm:$0x3]
    %v185 = vld [vmem:[%s2] sm:$0xff]
    %v186 = vld [vmem:[%s2 + $0x8] sm:$0xff]
    %v187 = vld [vmem:[%s2 + $0x10] sm:$0xff]
    %v188 = vld [vmem:[%s2 + $0x18] sm:$0xff]
    %vm189 = vcmask 7168
    %v190 = vsel %vm189, %v152, %v162
    %v191 = vsel %vm189, %v153, %v165
    %v192 = vsel %vm189, %v154, %v168
    %v193 = vsel %vm189, %v155, %v171
    %vm194 = vcmask 261120
    %v196 = vsel %vm194, %v184, 0
    %198 = vmatprep.subr.mxu0 0.0
    %199 = vmatpush1.msra.mxu0 %v190
    %200 = vmatprep.subr.mxu0 0.0
    %201 = vmatpush1.msra.mxu0 %v191
    %202 = vmatprep.subr.mxu0 0.0
    %203 = vmatpush1.msra.mxu0 %v192
    %204 = vmatprep.subr.mxu0 0.0
    %205 = vmatpush1.msra.mxu0 %v193
    %206 = vmatprep.subr.mxu0 0.0
    %207 = vmatpush1.msra.mxu0 0.0
    %208 = vmatprep.subr.mxu0 0.0
    %209 = vmatpush1.msra.mxu0 0.0
    %210 = vmatprep.subr.mxu0 0.0
    %211 = vmatpush1.msra.mxu0 0.0
    %212 = vmatprep.subr.mxu0 0.0
    %213 = vmatpush1.msra.mxu0 0.0
    %214 = vmatprep.subr.mxu0 0.0
    %215 = vmatpush1.msra.mxu0 0.0
    %216 = vmatprep.subr.mxu0 0.0
    %217 = vmatpush1.msra.mxu0 0.0
    %218 = vmatprep.subr.mxu0 0.0
    %219 = vmatpush1.msra.mxu0 0.0
    %220 = vmatprep.subr.mxu0 0.0
    %221 = vmatpush1.msra.mxu0 0.0
    %222 = vmatprep.subr.mxu0 0.0
    %223 = vmatpush1.msra.mxu0 0.0
    %224 = vmatprep.subr.mxu0 0.0
    %225 = vmatpush1.msra.mxu0 0.0
    %226 = vmatprep.subr.mxu0 0.0
    %227 = vmatpush1.msra.mxu0 0.0
    %228 = vmatprep.subr.mxu0 0.0
    %229 = vmatpush1.msra.mxu0 0.0
    %230 = vmatprep.subr.mxu0 0.0
    %231 = vmatpush1.msra.mxu0 0.0
    %232 = vmatprep.subr.mxu0 0.0
    %233 = vmatpush1.msra.mxu0 0.0
    %234 = vmatprep.subr.mxu0 0.0
    %235 = vmatpush1.msra.mxu0 0.0
    %236 = vmatprep.subr.mxu0 0.0
    %237 = vmatpush1.msra.mxu0 0.0
    %238 = vmatprep.subr.mxu0 0.0
    %239 = vmatpush1.msra.mxu0 0.0
    %240 = vmatprep.subr.mxu0 0.0
    %241 = vmatpush1.msra.mxu0 0.0
    %242 = vmatprep.subr.mxu0 0.0
    %243 = vmatpush1.msra.mxu0 0.0
    %244 = vmatprep.subr.mxu0 0.0
    %245 = vmatpush1.msra.mxu0 0.0
    %246 = vmatprep.subr.mxu0 0.0
    %247 = vmatpush1.msra.mxu0 0.0
    %248 = vmatprep.subr.mxu0 0.0
    %249 = vmatpush1.msra.mxu0 0.0
    %250 = vmatprep.subr.mxu0 0.0
    %251 = vmatpush1.msra.mxu0 0.0
    %252 = vmatprep.subr.mxu0 0.0
    %253 = vmatpush1.msra.mxu0 0.0
    %254 = vmatprep.subr.mxu0 0.0
    %255 = vmatpush1.msra.mxu0 0.0
    %256 = vmatprep.subr.mxu0 0.0
    %257 = vmatpush1.msra.mxu0 0.0
    %258 = vmatprep.subr.mxu0 0.0
    %259 = vmatpush1.msra.mxu0 0.0
    %260 = vmatprep.subr.mxu0 0.0
    %261 = vmatpush1.msra.mxu0 0.0
    %262 = vmatprep.mubr.f32.mxu0 0.0
    %263 = vmatmul.mubr.f32.gmra.mrb[0].mxu0 %v196
    %v264 = vpop.f32.mrb[0].mxu0
    %v265 = vadd.f32 0.0, %v264
    %v266 = vpop.f32.mrb[0].mxu0
    %267 = vdwg.mxu0
    %v268 = vmax.f32 %v265, 0.0
    %vm269 = vcmask 15360
    %v271 = vsel %vm269, %v185, 0
    %v274 = vsel %vm269, %v186, 0
    %v277 = vsel %vm269, %v187, 0
    %v280 = vsel %vm269, %v188, 0
    %vm282 = vcmask 1041408
    %v284 = vsel %vm282, %v268, 0
    %286 = vmatprep.subr.mxu0 0.0
    %287 = vmatpush1.msra.mxu0 %v284
    %288 = vmatprep.subr.mxu0 0.0
    %289 = vmatpush1.msra.mxu0 0.0
    %290 = vmatprep.subr.mxu0 0.0
    %291 = vmatpush1.msra.mxu0 0.0
    %292 = vmatprep.subr.mxu0 0.0
    %293 = vmatpush1.msra.mxu0 0.0
    %294 = vmatprep.subr.mxu0 0.0
    %295 = vmatpush1.msra.mxu0 0.0
    %296 = vmatprep.subr.mxu0 0.0
    %297 = vmatpush1.msra.mxu0 0.0
    %298 = vmatprep.subr.mxu0 0.0
    %299 = vmatpush1.msra.mxu0 0.0
    %300 = vmatprep.subr.mxu0 0.0
    %301 = vmatpush1.msra.mxu0 0.0
    %302 = vmatprep.subr.mxu0 0.0
    %303 = vmatpush1.msra.mxu0 0.0
    %304 = vmatprep.subr.mxu0 0.0
    %305 = vmatpush1.msra.mxu0 0.0
    %306 = vmatprep.subr.mxu0 0.0
    %307 = vmatpush1.msra.mxu0 0.0
    %308 = vmatprep.subr.mxu0 0.0
    %309 = vmatpush1.msra.mxu0 0.0
    %310 = vmatprep.subr.mxu0 0.0
    %311 = vmatpush1.msra.mxu0 0.0
    %312 = vmatprep.subr.mxu0 0.0
    %313 = vmatpush1.msra.mxu0 0.0
    %314 = vmatprep.subr.mxu0 0.0
    %315 = vmatpush1.msra.mxu0 0.0
    %316 = vmatprep.subr.mxu0 0.0
    %317 = vmatpush1.msra.mxu0 0.0
    %318 = vmatprep.subr.mxu0 0.0
    %319 = vmatpush1.msra.mxu0 0.0
    %320 = vmatprep.subr.mxu0 0.0
    %321 = vmatpush1.msra.mxu0 0.0
    %322 = vmatprep.subr.mxu0 0.0
    %323 = vmatpush1.msra.mxu0 0.0
    %324 = vmatprep.subr.mxu0 0.0
    %325 = vmatpush1.msra.mxu0 0.0
    %326 = vmatprep.subr.mxu0 0.0
    %327 = vmatpush1.msra.mxu0 0.0
    %328 = vmatprep.subr.mxu0 0.0
    %329 = vmatpush1.msra.mxu0 0.0
    %330 = vmatprep.subr.mxu0 0.0
    %331 = vmatpush1.msra.mxu0 0.0
    %332 = vmatprep.subr.mxu0 0.0
    %333 = vmatpush1.msra.mxu0 0.0
    %334 = vmatprep.subr.mxu0 0.0
    %335 = vmatpush1.msra.mxu0 0.0
    %336 = vmatprep.subr.mxu0 0.0
    %337 = vmatpush1.msra.mxu0 0.0
    %338 = vmatprep.subr.mxu0 0.0
    %339 = vmatpush1.msra.mxu0 0.0
    %340 = vmatprep.subr.mxu0 0.0
    %341 = vmatpush1.msra.mxu0 0.0
    %342 = vmatprep.subr.mxu0 0.0
    %343 = vmatpush1.msra.mxu0 0.0
    %344 = vmatprep.subr.mxu0 0.0
    %345 = vmatpush1.msra.mxu0 0.0
    %346 = vmatprep.subr.mxu0 0.0
    %347 = vmatpush1.msra.mxu0 0.0
    %348 = vmatprep.subr.mxu0 0.0
    %349 = vmatpush1.msra.mxu0 0.0
    %350 = vmatprep.mubr.f32.mxu0 0.0
    %351 = vmatmul.mubr.f32.gmra.mrb[0].mxu0 %v271
    %v352 = vpop.f32.mrb[0].mxu0
    %v353 = vadd.f32 0.0, %v352
    %v354 = vpop.f32.mrb[0].mxu0
    %355 = vmatprep.mubr.f32.mxu0 0.0
    %356 = vmatmul.mubr.f32.gmra.mrb[0].mxu0 %v274
    %v357 = vpop.f32.mrb[0].mxu0
    %v358 = vadd.f32 0.0, %v357
    %v359 = vpop.f32.mrb[0].mxu0
    %360 = vmatprep.mubr.f32.mxu0 0.0
    %361 = vmatmul.mubr.f32.gmra.mrb[0].mxu0 %v277
    %v362 = vpop.f32.mrb[0].mxu0
    %v363 = vadd.f32 0.0, %v362
    %v364 = vpop.f32.mrb[0].mxu0
    %365 = vmatprep.mubr.f32.mxu0 0.0
    %366 = vmatmul.mubr.f32.gmra.mrb[0].mxu0 %v280
    %v367 = vpop.f32.mrb[0].mxu0
    %v368 = vadd.f32 0.0, %v367
    %v369 = vpop.f32.mrb[0].mxu0
    %370 = vdwg.mxu0
    %375 = vrot.lane.b32.xlu0 %v353, 127
    %v376 = vpop.permute.xlu0 %375
    %377 = vrot.lane.b32.xlu0 %v358, 127
    %v378 = vpop.permute.xlu0 %377
    %379 = vrot.lane.b32.xlu0 %v363, 127
    %v380 = vpop.permute.xlu0 %379
    %381 = vrot.lane.b32.xlu0 %v368, 127
    %v382 = vpop.permute.xlu0 %381
    %v387 = vadd.f32 %v353, %v376
    %v388 = vadd.f32 %v358, %v378
    %v389 = vadd.f32 %v363, %v380
    %v390 = vadd.f32 %v368, %v382
    %v391 = vmul.f32 %v387, 0.5
    %v392 = vmul.f32 %v388, 0.5
    %v393 = vmul.f32 %v389, 0.5
    %v394 = vmul.f32 %v390, 0.5
    %v395 = vtanh.pop %v391
    %v396 = vtanh.pop %v392
    %v397 = vtanh.pop %v393
    %v398 = vtanh.pop %v394
    %v399 = vmul.f32 %v395, 0.5
    %v400 = vmul.f32 %v396, 0.5
    %v401 = vmul.f32 %v397, 0.5
    %v402 = vmul.f32 %v398, 0.5
    %v403 = vadd.f32 %v399, 0.5
    %v404 = vadd.f32 %v400, 0.5
    %v405 = vadd.f32 %v401, 0.5
    %v406 = vadd.f32 %v402, 0.5
    %408 = vset.pattern.permute.xlu0 0
    %409 = vperm.xlu0 %408, %v403
    %v410 = vpop.permute.xlu0 %409
    %413 = vset.pattern.permute.xlu0 0
    %414 = vperm.xlu0 %413, %v404
    %v415 = vpop.permute.xlu0 %414
    %418 = vset.pattern.permute.xlu0 0
    %419 = vperm.xlu0 %418, %v405
    %v420 = vpop.permute.xlu0 %419
    %423 = vset.pattern.permute.xlu0 0
    %424 = vperm.xlu0 %423, %v406
    %v425 = vpop.permute.xlu0 %424
    %v427 = vmul.f32 %v31, %v410
    %v428 = vmul.f32 %v32, %v410
    %v429 = vmul.f32 %v33, %v415
    %v430 = vmul.f32 %v34, %v415
    %v431 = vmul.f32 %v35, %v420
    %v432 = vmul.f32 %v36, %v420
    %v433 = vmul.f32 %v37, %v425
    %v434 = vmul.f32 %v38, %v425
    %v435 = vadd.f32 %v427, %v429
    %v436 = vadd.f32 %v435, %v431
    %v437 = vadd.f32 %v436, %v433
    %v438 = vrot.slane %v437, 4
    %v439 = vadd.f32 %v437, %v438
    %v440 = vrot.slane %v439, 2
    %v441 = vadd.f32 %v439, %v440
    %v442 = vrot.slane %v441, 1
    %v443 = vadd.f32 %v441, %v442
    %v444 = vadd.f32 %v428, %v430
    %v445 = vadd.f32 %v444, %v432
    %v446 = vadd.f32 %v445, %v434
    %v447 = vrot.slane %v446, 4
    %v448 = vadd.f32 %v446, %v447
    %v449 = vrot.slane %v448, 2
    %v450 = vadd.f32 %v448, %v449
    %v451 = vrot.slane %v450, 1
    %v452 = vadd.f32 %v450, %v451
    %v453 = vrcp.pop 32.0
    %v454 = vmul.f32 %v443, %v453
    %v455 = vmul.f32 %v452, %v453
    %v456 = vmax.f32 %v427, %v431
    %v457 = vmax.f32 %v429, %v433
    %v458 = vmax.f32 %v456, %v457
    %v459 = vrot.slane %v458, 4
    %v460 = vmax.f32 %v458, %v459
    %v461 = vrot.slane %v460, 2
    %v462 = vmax.f32 %v460, %v461
    %v463 = vrot.slane %v462, 1
    %v464 = vmax.f32 %v462, %v463
    %v465 = vmax.f32 %v428, %v432
    %v466 = vmax.f32 %v430, %v434
    %v467 = vmax.f32 %v465, %v466
    %v468 = vrot.slane %v467, 4
    %v469 = vmax.f32 %v467, %v468
    %v470 = vrot.slane %v469, 2
    %v471 = vmax.f32 %v469, %v470
    %v472 = vrot.slane %v471, 1
    %v473 = vmax.f32 %v471, %v472
    %v474 = vsel %vm189, %v156, %v174
    %v475 = vsel %vm189, %v157, %v177
    %v476 = vsel %vm189, %v158, %v180
    %v477 = vsel %vm189, %v159, %v183
    %478 = vmatprep.subr.mxu0 0.0
    %479 = vmatpush1.msra.mxu0 %v474
    %480 = vmatprep.subr.mxu0 0.0
    %481 = vmatpush1.msra.mxu0 %v475
    %482 = vmatprep.subr.mxu0 0.0
    %483 = vmatpush1.msra.mxu0 %v476
    %484 = vmatprep.subr.mxu0 0.0
    %485 = vmatpush1.msra.mxu0 %v477
    %486 = vmatprep.subr.mxu0 0.0
    %487 = vmatpush1.msra.mxu0 0.0
    %488 = vmatprep.subr.mxu0 0.0
    %489 = vmatpush1.msra.mxu0 0.0
    %490 = vmatprep.subr.mxu0 0.0
    %491 = vmatpush1.msra.mxu0 0.0
    %492 = vmatprep.subr.mxu0 0.0
    %493 = vmatpush1.msra.mxu0 0.0
    %494 = vmatprep.subr.mxu0 0.0
    %495 = vmatpush1.msra.mxu0 0.0
    %496 = vmatprep.subr.mxu0 0.0
    %497 = vmatpush1.msra.mxu0 0.0
    %498 = vmatprep.subr.mxu0 0.0
    %499 = vmatpush1.msra.mxu0 0.0
    %500 = vmatprep.subr.mxu0 0.0
    %501 = vmatpush1.msra.mxu0 0.0
    %502 = vmatprep.subr.mxu0 0.0
    %503 = vmatpush1.msra.mxu0 0.0
    %504 = vmatprep.subr.mxu0 0.0
    %505 = vmatpush1.msra.mxu0 0.0
    %506 = vmatprep.subr.mxu0 0.0
    %507 = vmatpush1.msra.mxu0 0.0
    %508 = vmatprep.subr.mxu0 0.0
    %509 = vmatpush1.msra.mxu0 0.0
    %510 = vmatprep.subr.mxu0 0.0
    %511 = vmatpush1.msra.mxu0 0.0
    %512 = vmatprep.subr.mxu0 0.0
    %513 = vmatpush1.msra.mxu0 0.0
    %514 = vmatprep.subr.mxu0 0.0
    %515 = vmatpush1.msra.mxu0 0.0
    %516 = vmatprep.subr.mxu0 0.0
    %517 = vmatpush1.msra.mxu0 0.0
    %518 = vmatprep.subr.mxu0 0.0
    %519 = vmatpush1.msra.mxu0 0.0
    %520 = vmatprep.subr.mxu0 0.0
    %521 = vmatpush1.msra.mxu0 0.0
    %522 = vmatprep.subr.mxu0 0.0
    %523 = vmatpush1.msra.mxu0 0.0
    %524 = vmatprep.subr.mxu0 0.0
    %525 = vmatpush1.msra.mxu0 0.0
    %526 = vmatprep.subr.mxu0 0.0
    %527 = vmatpush1.msra.mxu0 0.0
    %528 = vmatprep.subr.mxu0 0.0
    %529 = vmatpush1.msra.mxu0 0.0
    %530 = vmatprep.subr.mxu0 0.0
    %531 = vmatpush1.msra.mxu0 0.0
    %532 = vmatprep.subr.mxu0 0.0
    %533 = vmatpush1.msra.mxu0 0.0
    %534 = vmatprep.subr.mxu0 0.0
    %535 = vmatpush1.msra.mxu0 0.0
    %536 = vmatprep.subr.mxu0 0.0
    %537 = vmatpush1.msra.mxu0 0.0
    %538 = vmatprep.subr.mxu0 0.0
    %539 = vmatpush1.msra.mxu0 0.0
    %540 = vmatprep.subr.mxu0 0.0
    %541 = vmatpush1.msra.mxu0 0.0
    %542 = vmatprep.mubr.f32.mxu0 0.0
    %543 = vmatmul.mubr.f32.gmra.mrb[0].mxu0 %v196
    %v544 = vpop.f32.mrb[0].mxu0
    %v545 = vadd.f32 0.0, %v544
    %v546 = vpop.f32.mrb[0].mxu0
    %547 = vdwg.mxu0
    %v548 = vmax.f32 %v545, 0.0
    %v550 = vsel %vm282, %v548, 0
    %552 = vmatprep.subr.mxu0 0.0
    %553 = vmatpush1.msra.mxu0 %v550
    %554 = vmatprep.subr.mxu0 0.0
    %555 = vmatpush1.msra.mxu0 0.0
    %556 = vmatprep.subr.mxu0 0.0
    %557 = vmatpush1.msra.mxu0 0.0
    %558 = vmatprep.subr.mxu0 0.0
    %559 = vmatpush1.msra.mxu0 0.0
    %560 = vmatprep.subr.mxu0 0.0
    %561 = vmatpush1.msra.mxu0 0.0
    %562 = vmatprep.subr.mxu0 0.0
    %563 = vmatpush1.msra.mxu0 0.0
    %564 = vmatprep.subr.mxu0 0.0
    %565 = vmatpush1.msra.mxu0 0.0
    %566 = vmatprep.subr.mxu0 0.0
    %567 = vmatpush1.msra.mxu0 0.0
    %568 = vmatprep.subr.mxu0 0.0
    %569 = vmatpush1.msra.mxu0 0.0
    %570 = vmatprep.subr.mxu0 0.0
    %571 = vmatpush1.msra.mxu0 0.0
    %572 = vmatprep.subr.mxu0 0.0
    %573 = vmatpush1.msra.mxu0 0.0
    %574 = vmatprep.subr.mxu0 0.0
    %575 = vmatpush1.msra.mxu0 0.0
    %576 = vmatprep.subr.mxu0 0.0
    %577 = vmatpush1.msra.mxu0 0.0
    %578 = vmatprep.subr.mxu0 0.0
    %579 = vmatpush1.msra.mxu0 0.0
    %580 = vmatprep.subr.mxu0 0.0
    %581 = vmatpush1.msra.mxu0 0.0
    %582 = vmatprep.subr.mxu0 0.0
    %583 = vmatpush1.msra.mxu0 0.0
    %584 = vmatprep.subr.mxu0 0.0
    %585 = vmatpush1.msra.mxu0 0.0
    %586 = vmatprep.subr.mxu0 0.0
    %587 = vmatpush1.msra.mxu0 0.0
    %588 = vmatprep.subr.mxu0 0.0
    %589 = vmatpush1.msra.mxu0 0.0
    %590 = vmatprep.subr.mxu0 0.0
    %591 = vmatpush1.msra.mxu0 0.0
    %592 = vmatprep.subr.mxu0 0.0
    %593 = vmatpush1.msra.mxu0 0.0
    %594 = vmatprep.subr.mxu0 0.0
    %595 = vmatpush1.msra.mxu0 0.0
    %596 = vmatprep.subr.mxu0 0.0
    %597 = vmatpush1.msra.mxu0 0.0
    %598 = vmatprep.subr.mxu0 0.0
    %599 = vmatpush1.msra.mxu0 0.0
    %600 = vmatprep.subr.mxu0 0.0
    %601 = vmatpush1.msra.mxu0 0.0
    %602 = vmatprep.subr.mxu0 0.0
    %603 = vmatpush1.msra.mxu0 0.0
    %604 = vmatprep.subr.mxu0 0.0
    %605 = vmatpush1.msra.mxu0 0.0
    %606 = vmatprep.subr.mxu0 0.0
    %607 = vmatpush1.msra.mxu0 0.0
    %608 = vmatprep.subr.mxu0 0.0
    %609 = vmatpush1.msra.mxu0 0.0
    %610 = vmatprep.subr.mxu0 0.0
    %611 = vmatpush1.msra.mxu0 0.0
    %612 = vmatprep.subr.mxu0 0.0
    %613 = vmatpush1.msra.mxu0 0.0
    %614 = vmatprep.subr.mxu0 0.0
    %615 = vmatpush1.msra.mxu0 0.0
    %616 = vmatprep.mubr.f32.mxu0 0.0
    %617 = vmatmul.mubr.f32.gmra.mrb[0].mxu0 %v271
    %v618 = vpop.f32.mrb[0].mxu0
    %v619 = vadd.f32 0.0, %v618
    %v620 = vpop.f32.mrb[0].mxu0
    %621 = vmatprep.mubr.f32.mxu0 0.0
    %622 = vmatmul.mubr.f32.gmra.mrb[0].mxu0 %v274
    %v623 = vpop.f32.mrb[0].mxu0
    %v624 = vadd.f32 0.0, %v623
    %v625 = vpop.f32.mrb[0].mxu0
    %626 = vmatprep.mubr.f32.mxu0 0.0
    %627 = vmatmul.mubr.f32.gmra.mrb[0].mxu0 %v277
    %v628 = vpop.f32.mrb[0].mxu0
    %v629 = vadd.f32 0.0, %v628
    %v630 = vpop.f32.mrb[0].mxu0
    %631 = vmatprep.mubr.f32.mxu0 0.0
    %632 = vmatmul.mubr.f32.gmra.mrb[0].mxu0 %v280
    %v633 = vpop.f32.mrb[0].mxu0
    %v634 = vadd.f32 0.0, %v633
    %v635 = vpop.f32.mrb[0].mxu0
    %636 = vdwg.mxu0
    %641 = vrot.lane.b32.xlu0 %v619, 127
    %v642 = vpop.permute.xlu0 %641
    %643 = vrot.lane.b32.xlu0 %v624, 127
    %v644 = vpop.permute.xlu0 %643
    %645 = vrot.lane.b32.xlu0 %v629, 127
    %v646 = vpop.permute.xlu0 %645
    %647 = vrot.lane.b32.xlu0 %v634, 127
    %v648 = vpop.permute.xlu0 %647
    %v653 = vadd.f32 %v619, %v642
    %v654 = vadd.f32 %v624, %v644
    %v655 = vadd.f32 %v629, %v646
    %v656 = vadd.f32 %v634, %v648
    %v657 = vmul.f32 %v653, 0.5
    %v658 = vmul.f32 %v654, 0.5
    %v659 = vmul.f32 %v655, 0.5
    %v660 = vmul.f32 %v656, 0.5
    %v661 = vtanh.pop %v657
    %v662 = vtanh.pop %v658
    %v663 = vtanh.pop %v659
    %v664 = vtanh.pop %v660
    %v665 = vmul.f32 %v661, 0.5
    %v666 = vmul.f32 %v662, 0.5
    %v667 = vmul.f32 %v663, 0.5
    %v668 = vmul.f32 %v664, 0.5
    %v669 = vadd.f32 %v665, 0.5
    %v670 = vadd.f32 %v666, 0.5
    %v671 = vadd.f32 %v667, 0.5
    %v672 = vadd.f32 %v668, 0.5
    %674 = vset.pattern.permute.xlu0 0
    %675 = vperm.xlu0 %674, %v669
    %v676 = vpop.permute.xlu0 %675
    %679 = vset.pattern.permute.xlu0 0
    %680 = vperm.xlu0 %679, %v670
    %v681 = vpop.permute.xlu0 %680
    %684 = vset.pattern.permute.xlu0 0
    %685 = vperm.xlu0 %684, %v671
    %v686 = vpop.permute.xlu0 %685
    %689 = vset.pattern.permute.xlu0 0
    %690 = vperm.xlu0 %689, %v672
    %v691 = vpop.permute.xlu0 %690
    %v693 = vmul.f32 %v39, %v676
    %v694 = vmul.f32 %v40, %v676
    %v695 = vmul.f32 %v41, %v681
    %v696 = vmul.f32 %v42, %v681
    %v697 = vmul.f32 %v43, %v686
    %v698 = vmul.f32 %v44, %v686
    %v699 = vmul.f32 %v45, %v691
    %v700 = vmul.f32 %v46, %v691
    %v701 = vadd.f32 %v693, %v695
    %v702 = vadd.f32 %v701, %v697
    %v703 = vadd.f32 %v702, %v699
    %v704 = vrot.slane %v703, 4
    %v705 = vadd.f32 %v703, %v704
    %v706 = vrot.slane %v705, 2
    %v707 = vadd.f32 %v705, %v706
    %v708 = vrot.slane %v707, 1
    %v709 = vadd.f32 %v707, %v708
    %v710 = vadd.f32 %v694, %v696
    %v711 = vadd.f32 %v710, %v698
    %v712 = vadd.f32 %v711, %v700
    %v713 = vrot.slane %v712, 4
    %v714 = vadd.f32 %v712, %v713
    %v715 = vrot.slane %v714, 2
    %v716 = vadd.f32 %v714, %v715
    %v717 = vrot.slane %v716, 1
    %v718 = vadd.f32 %v716, %v717
    %v719 = vmul.f32 %v709, %v453
    %v720 = vmul.f32 %v718, %v453
    %v721 = vmax.f32 %v693, %v697
    %v722 = vmax.f32 %v695, %v699
    %v723 = vmax.f32 %v721, %v722
    %v724 = vrot.slane %v723, 4
    %v725 = vmax.f32 %v723, %v724
    %v726 = vrot.slane %v725, 2
    %v727 = vmax.f32 %v725, %v726
    %v728 = vrot.slane %v727, 1
    %v729 = vmax.f32 %v727, %v728
    %v730 = vmax.f32 %v694, %v698
    %v731 = vmax.f32 %v696, %v700
    %v732 = vmax.f32 %v730, %v731
    %v733 = vrot.slane %v732, 4
    %v734 = vmax.f32 %v732, %v733
    %v735 = vrot.slane %v734, 2
    %v736 = vmax.f32 %v734, %v735
    %v737 = vrot.slane %v736, 1
    %v738 = vmax.f32 %v736, %v737
    %v743 = vrot.slane %v719, 7
    %v744 = vrot.slane %v720, 7
    %v745 = vrot.slane %v729, 7
    %v746 = vrot.slane %v738, 7
    %vm751 = vcmask 1040384
    %v752 = vsel %vm751, %v454, %v743
    %v753 = vsel %vm751, %v455, %v744
    %v754 = vsel %vm751, %v464, %v745
    %v755 = vsel %vm751, %v473, %v746
    %v756 = vld [vmem:[#allocation2] sm:$0xff]
    %v757 = vld [vmem:[#allocation2 + $0x8] sm:$0xff]
    %v758 = vld [vmem:[#allocation2 + $0x10] sm:$0xff]
    %v759 = vld [vmem:[#allocation2 + $0x18] sm:$0xff]
    %v760 = vld [vmem:[#allocation2 + $0x20] sm:$0xff]
    %v761 = vld [vmem:[#allocation2 + $0x28] sm:$0xff]
    %v762 = vld [vmem:[#allocation2 + $0x30] sm:$0xff]
    %v763 = vld [vmem:[#allocation2 + $0x38] sm:$0xff]
    %v764 = vld [vmem:[#allocation2 + $0x40] sm:$0xff]
    %v765 = vld [vmem:[#allocation2 + $0x48] sm:$0xff]
    %v766 = vld [vmem:[#allocation2 + $0x50] sm:$0xff]
    %v767 = vld [vmem:[#allocation2 + $0x58] sm:$0xff]
    %v768 = vld [vmem:[#allocation2 + $0x60] sm:$0xff]
    %v769 = vld [vmem:[#allocation2 + $0x68] sm:$0xff]
    %v770 = vld [vmem:[#allocation2 + $0x70] sm:$0xff]
    %v771 = vld [vmem:[#allocation2 + $0x78] sm:$0xff]
    %v772 = vld [vmem:[#allocation2 + $0x80] sm:$0xff]
    %v773 = vld [vmem:[#allocation2 + $0x88] sm:$0xff]
    %v774 = vld [vmem:[#allocation2 + $0x90] sm:$0xff]
    %v775 = vld [vmem:[#allocation2 + $0x98] sm:$0xff]
    %v776 = vld [vmem:[#allocation2 + $0xa0] sm:$0xff]
    %v777 = vld [vmem:[#allocation2 + $0xa8] sm:$0xff]
    %v778 = vld [vmem:[#allocation2 + $0xb0] sm:$0xff]
    %v779 = vld [vmem:[#allocation2 + $0xb8] sm:$0xff]
    %v780 = vld [vmem:[#allocation2 + $0xc0] sm:$0xff]
    %v781 = vld [vmem:[#allocation2 + $0xc8] sm:$0xff]
    %v782 = vld [vmem:[#allocation2 + $0xd0] sm:$0xff]
    %v783 = vld [vmem:[#allocation2 + $0xd8] sm:$0xff]
    %v784 = vld [vmem:[#allocation2 + $0xe0] sm:$0xff]
    %v785 = vld [vmem:[#allocation2 + $0xe8] sm:$0xff]
    %v786 = vld [vmem:[#allocation2 + $0xf0] sm:$0xff]
    %v787 = vld [vmem:[#allocation2 + $0xf8] sm:$0xff]
    %v788 = vld [vmem:[#allocation2 + $0x100] sm:$0xff]
    %v789 = vld [vmem:[#allocation2 + $0x108] sm:$0xff]
    %v790 = vld [vmem:[#allocation2 + $0x110] sm:$0xff]
    %v791 = vld [vmem:[#allocation2 + $0x118] sm:$0xff]
    %v792 = vld [vmem:[#allocation2 + $0x120] sm:$0xff]
    %v793 = vld [vmem:[#allocation2 + $0x128] sm:$0xff]
    %v794 = vld [vmem:[#allocation2 + $0x130] sm:$0xff]
    %v795 = vld [vmem:[#allocation2 + $0x138] sm:$0xff]
    %v796 = vld [vmem:[#allocation2 + $0x140] sm:$0xff]
    %v797 = vld [vmem:[#allocation2 + $0x148] sm:$0xff]
    %v798 = vld [vmem:[#allocation2 + $0x150] sm:$0xff]
    %v799 = vld [vmem:[#allocation2 + $0x158] sm:$0xff]
    %v800 = vld [vmem:[#allocation2 + $0x160] sm:$0xff]
    %v801 = vld [vmem:[#allocation2 + $0x168] sm:$0xff]
    %v802 = vld [vmem:[#allocation2 + $0x170] sm:$0xff]
    %v803 = vld [vmem:[#allocation2 + $0x178] sm:$0xff]
    %v804 = vld [vmem:[#allocation2 + $0x180] sm:$0xff]
    %v805 = vld [vmem:[#allocation2 + $0x188] sm:$0xff]
    %v806 = vld [vmem:[#allocation2 + $0x190] sm:$0xff]
    %v807 = vld [vmem:[#allocation2 + $0x198] sm:$0xff]
    %v808 = vld [vmem:[#allocation2 + $0x1a0] sm:$0xff]
    %v809 = vld [vmem:[#allocation2 + $0x1a8] sm:$0xff]
    %v810 = vld [vmem:[#allocation2 + $0x1b0] sm:$0xff]
    %v811 = vld [vmem:[#allocation2 + $0x1b8] sm:$0xff]
    %v812 = vld [vmem:[#allocation2 + $0x1c0] sm:$0xff]
    %v813 = vld [vmem:[#allocation2 + $0x1c8] sm:$0xff]
    %v814 = vld [vmem:[#allocation2 + $0x1d0] sm:$0xff]
    %v815 = vld [vmem:[#allocation2 + $0x1d8] sm:$0xff]
    %v816 = vld [vmem:[#allocation2 + $0x1e0] sm:$0xff]
    %v817 = vld [vmem:[#allocation2 + $0x1e8] sm:$0xff]
    %v818 = vld [vmem:[#allocation2 + $0x1f0] sm:$0xff]
    %v819 = vld [vmem:[#allocation2 + $0x1f8] sm:$0xff]
    %v820 = vld [vmem:[#allocation2 + $0x200] sm:$0xff]
    %v821 = vld [vmem:[#allocation2 + $0x208] sm:$0xff]
    %v822 = vld [vmem:[#allocation2 + $0x210] sm:$0xff]
    %v823 = vld [vmem:[#allocation2 + $0x218] sm:$0xff]
    %v824 = vld [vmem:[#allocation2 + $0x220] sm:$0xff]
    %v825 = vld [vmem:[#allocation2 + $0x228] sm:$0xff]
    %v826 = vld [vmem:[#allocation2 + $0x230] sm:$0xff]
    %v827 = vld [vmem:[#allocation2 + $0x238] sm:$0xff]
    %v828 = vld [vmem:[#allocation2 + $0x240] sm:$0xff]
    %v829 = vld [vmem:[#allocation2 + $0x248] sm:$0xff]
    %v830 = vld [vmem:[#allocation2 + $0x250] sm:$0xff]
    %v831 = vld [vmem:[#allocation2 + $0x258] sm:$0xff]
    %v832 = vld [vmem:[#allocation2 + $0x260] sm:$0xff]
    %v833 = vld [vmem:[#allocation2 + $0x268] sm:$0xff]
    %v834 = vld [vmem:[#allocation2 + $0x270] sm:$0xff]
    %v835 = vld [vmem:[#allocation2 + $0x278] sm:$0xff]
    %v836 = vld [vmem:[#allocation2 + $0x280] sm:$0xff]
    %v837 = vld [vmem:[#allocation2 + $0x288] sm:$0xff]
    %v838 = vld [vmem:[#allocation2 + $0x290] sm:$0xff]
    %v839 = vld [vmem:[#allocation2 + $0x298] sm:$0xff]
    %v840 = vld [vmem:[#allocation2 + $0x2a0] sm:$0xff]
    %v841 = vld [vmem:[#allocation2 + $0x2a8] sm:$0xff]
    %v842 = vld [vmem:[#allocation2 + $0x2b0] sm:$0xff]
    %v843 = vld [vmem:[#allocation2 + $0x2b8] sm:$0xff]
    %v844 = vld [vmem:[#allocation2 + $0x2c0] sm:$0xff]
    %v845 = vld [vmem:[#allocation2 + $0x2c8] sm:$0xff]
    %v846 = vld [vmem:[#allocation2 + $0x2d0] sm:$0xff]
    %v847 = vld [vmem:[#allocation2 + $0x2d8] sm:$0xff]
    %v848 = vld [vmem:[#allocation2 + $0x2e0] sm:$0xff]
    %v849 = vld [vmem:[#allocation2 + $0x2e8] sm:$0xff]
    %v850 = vld [vmem:[#allocation2 + $0x2f0] sm:$0xff]
    %v851 = vld [vmem:[#allocation2 + $0x2f8] sm:$0xff]
    %v852 = vld [vmem:[#allocation2 + $0x300] sm:$0xff]
    %v853 = vld [vmem:[#allocation2 + $0x308] sm:$0xff]
    %v854 = vld [vmem:[#allocation2 + $0x310] sm:$0xff]
    %v855 = vld [vmem:[#allocation2 + $0x318] sm:$0xff]
    %v856 = vld [vmem:[#allocation2 + $0x320] sm:$0xff]
    %v857 = vld [vmem:[#allocation2 + $0x328] sm:$0xff]
    %v858 = vld [vmem:[#allocation2 + $0x330] sm:$0xff]
    %v859 = vld [vmem:[#allocation2 + $0x338] sm:$0xff]
    %v860 = vld [vmem:[#allocation2 + $0x340] sm:$0xff]
    %v861 = vld [vmem:[#allocation2 + $0x348] sm:$0xff]
    %v862 = vld [vmem:[#allocation2 + $0x350] sm:$0xff]
    %v863 = vld [vmem:[#allocation2 + $0x358] sm:$0xff]
    %v864 = vld [vmem:[#allocation2 + $0x360] sm:$0xff]
    %v865 = vld [vmem:[#allocation2 + $0x368] sm:$0xff]
    %v866 = vld [vmem:[#allocation2 + $0x370] sm:$0xff]
    %v867 = vld [vmem:[#allocation2 + $0x378] sm:$0xff]
    %v868 = vld [vmem:[#allocation2 + $0x380] sm:$0xff]
    %v869 = vld [vmem:[#allocation2 + $0x388] sm:$0xff]
    %v870 = vld [vmem:[#allocation2 + $0x390] sm:$0xff]
    %v871 = vld [vmem:[#allocation2 + $0x398] sm:$0xff]
    %v872 = vld [vmem:[#allocation2 + $0x3a0] sm:$0xff]
    %v873 = vld [vmem:[#allocation2 + $0x3a8] sm:$0xff]
    %v874 = vld [vmem:[#allocation2 + $0x3b0] sm:$0xff]
    %v875 = vld [vmem:[#allocation2 + $0x3b8] sm:$0xff]
    %v876 = vld [vmem:[#allocation2 + $0x3c0] sm:$0xff]
    %v877 = vld [vmem:[#allocation2 + $0x3c8] sm:$0xff]
    %v878 = vld [vmem:[#allocation2 + $0x3d0] sm:$0xff]
    %v879 = vld [vmem:[#allocation2 + $0x3d8] sm:$0xff]
    %v880 = vld [vmem:[#allocation2 + $0x3e0] sm:$0xff]
    %v881 = vld [vmem:[#allocation2 + $0x3e8] sm:$0xff]
    %v882 = vld [vmem:[#allocation2 + $0x3f0] sm:$0xff]
    %v883 = vld [vmem:[#allocation2 + $0x3f8] sm:$0xff]
    %884 = vmatprep.subr.mxu0 %v757
    %885 = vmatpush1.msra.mxu0 %v756
    %886 = vmatprep.subr.mxu0 %v759
    %887 = vmatpush1.msra.mxu0 %v758
    %888 = vmatprep.subr.mxu0 %v761
    %889 = vmatpush1.msra.mxu0 %v760
    %890 = vmatprep.subr.mxu0 %v763
    %891 = vmatpush1.msra.mxu0 %v762
    %892 = vmatprep.subr.mxu0 %v765
    %893 = vmatpush1.msra.mxu0 %v764
    %894 = vmatprep.subr.mxu0 %v767
    %895 = vmatpush1.msra.mxu0 %v766
    %896 = vmatprep.subr.mxu0 %v769
    %897 = vmatpush1.msra.mxu0 %v768
    %898 = vmatprep.subr.mxu0 %v771
    %899 = vmatpush1.msra.mxu0 %v770
    %900 = vmatprep.subr.mxu0 %v773
    %901 = vmatpush1.msra.mxu0 %v772
    %902 = vmatprep.subr.mxu0 %v775
    %903 = vmatpush1.msra.mxu0 %v774
    %904 = vmatprep.subr.mxu0 %v777
    %905 = vmatpush1.msra.mxu0 %v776
    %906 = vmatprep.subr.mxu0 %v779
    %907 = vmatpush1.msra.mxu0 %v778
    %908 = vmatprep.subr.mxu0 %v781
    %909 = vmatpush1.msra.mxu0 %v780
    %910 = vmatprep.subr.mxu0 %v783
    %911 = vmatpush1.msra.mxu0 %v782
    %912 = vmatprep.subr.mxu0 %v785
    %913 = vmatpush1.msra.mxu0 %v784
    %914 = vmatprep.subr.mxu0 %v787
    %915 = vmatpush1.msra.mxu0 %v786
    %916 = vmatprep.subr.mxu0 %v789
    %917 = vmatpush1.msra.mxu0 %v788
    %918 = vmatprep.subr.mxu0 %v791
    %919 = vmatpush1.msra.mxu0 %v790
    %920 = vmatprep.subr.mxu0 %v793
    %921 = vmatpush1.msra.mxu0 %v792
    %922 = vmatprep.subr.mxu0 %v795
    %923 = vmatpush1.msra.mxu0 %v794
    %924 = vmatprep.subr.mxu0 %v797
    %925 = vmatpush1.msra.mxu0 %v796
    %926 = vmatprep.subr.mxu0 %v799
    %927 = vmatpush1.msra.mxu0 %v798
    %928 = vmatprep.subr.mxu0 %v801
    %929 = vmatpush1.msra.mxu0 %v800
    %930 = vmatprep.subr.mxu0 %v803
    %931 = vmatpush1.msra.mxu0 %v802
    %932 = vmatprep.subr.mxu0 %v805
    %933 = vmatpush1.msra.mxu0 %v804
    %934 = vmatprep.subr.mxu0 %v807
    %935 = vmatpush1.msra.mxu0 %v806
    %936 = vmatprep.subr.mxu0 %v809
    %937 = vmatpush1.msra.mxu0 %v808
    %938 = vmatprep.subr.mxu0 %v811
    %939 = vmatpush1.msra.mxu0 %v810
    %940 = vmatprep.subr.mxu0 %v813
    %941 = vmatpush1.msra.mxu0 %v812
    %942 = vmatprep.subr.mxu0 %v815
    %943 = vmatpush1.msra.mxu0 %v814
    %944 = vmatprep.subr.mxu0 %v817
    %945 = vmatpush1.msra.mxu0 %v816
    %946 = vmatprep.subr.mxu0 %v819
    %947 = vmatpush1.msra.mxu0 %v818
    %948 = vmatprep.mubr.f32.mxu0 %v753
    %949 = vmatmul.mubr.f32.gmra.mrb[0].mxu0 %v752
    %v950 = vpop.f32.mrb[0].mxu0
    %v951 = vadd.f32 0.0, %v950
    %v952 = vpop.f32.mrb[0].mxu0
    %v953 = vadd.f32 0.0, %v952
    %954 = vdwg.mxu0
    %955 = vmatprep.subr.mxu0 %v821
    %956 = vmatpush1.msra.mxu0 %v820
    %957 = vmatprep.subr.mxu0 %v823
    %958 = vmatpush1.msra.mxu0 %v822
    %959 = vmatprep.subr.mxu0 %v825
    %960 = vmatpush1.msra.mxu0 %v824
    %961 = vmatprep.subr.mxu0 %v827
    %962 = vmatpush1.msra.mxu0 %v826
    %963 = vmatprep.subr.mxu0 %v829
    %964 = vmatpush1.msra.mxu0 %v828
    %965 = vmatprep.subr.mxu0 %v831
    %966 = vmatpush1.msra.mxu0 %v830
    %967 = vmatprep.subr.mxu0 %v833
    %968 = vmatpush1.msra.mxu0 %v832
    %969 = vmatprep.subr.mxu0 %v835
    %970 = vmatpush1.msra.mxu0 %v834
    %971 = vmatprep.subr.mxu0 %v837
    %972 = vmatpush1.msra.mxu0 %v836
    %973 = vmatprep.subr.mxu0 %v839
    %974 = vmatpush1.msra.mxu0 %v838
    %975 = vmatprep.subr.mxu0 %v841
    %976 = vmatpush1.msra.mxu0 %v840
    %977 = vmatprep.subr.mxu0 %v843
    %978 = vmatpush1.msra.mxu0 %v842
    %979 = vmatprep.subr.mxu0 %v845
    %980 = vmatpush1.msra.mxu0 %v844
    %981 = vmatprep.subr.mxu0 %v847
    %982 = vmatpush1.msra.mxu0 %v846
    %983 = vmatprep.subr.mxu0 %v849
    %984 = vmatpush1.msra.mxu0 %v848
    %985 = vmatprep.subr.mxu0 %v851
    %986 = vmatpush1.msra.mxu0 %v850
    %987 = vmatprep.subr.mxu0 %v853
    %988 = vmatpush1.msra.mxu0 %v852
    %989 = vmatprep.subr.mxu0 %v855
    %990 = vmatpush1.msra.mxu0 %v854
    %991 = vmatprep.subr.mxu0 %v857
    %992 = vmatpush1.msra.mxu0 %v856
    %993 = vmatprep.subr.mxu0 %v859
    %994 = vmatpush1.msra.mxu0 %v858
    %995 = vmatprep.subr.mxu0 %v861
    %996 = vmatpush1.msra.mxu0 %v860
    %997 = vmatprep.subr.mxu0 %v863
    %998 = vmatpush1.msra.mxu0 %v862
    %999 = vmatprep.subr.mxu0 %v865
    %1000 = vmatpush1.msra.mxu0 %v864
    %1001 = vmatprep.subr.mxu0 %v867
    %1002 = vmatpush1.msra.mxu0 %v866
    %1003 = vmatprep.subr.mxu0 %v869
    %1004 = vmatpush1.msra.mxu0 %v868
    %1005 = vmatprep.subr.mxu0 %v871
    %1006 = vmatpush1.msra.mxu0 %v870
    %1007 = vmatprep.subr.mxu0 %v873
    %1008 = vmatpush1.msra.mxu0 %v872
    %1009 = vmatprep.subr.mxu0 %v875
    %1010 = vmatpush1.msra.mxu0 %v874
    %1011 = vmatprep.subr.mxu0 %v877
    %1012 = vmatpush1.msra.mxu0 %v876
    %1013 = vmatprep.subr.mxu0 %v879
    %1014 = vmatpush1.msra.mxu0 %v878
    %1015 = vmatprep.subr.mxu0 %v881
    %1016 = vmatpush1.msra.mxu0 %v880
    %1017 = vmatprep.subr.mxu0 %v883
    %1018 = vmatpush1.msra.mxu0 %v882
    %1019 = vmatprep.mubr.f32.mxu0 %v755
    %1020 = vmatmul.mubr.f32.gmra.mrb[0].mxu0 %v754
    %v1021 = vpop.f32.mrb[0].mxu0
    %v1022 = vadd.f32 %v951, %v1021
    %v1023 = vpop.f32.mrb[0].mxu0
    %v1024 = vadd.f32 %v953, %v1023
    %1025 = vdwg.mxu0
    %v1026 = vmul.f32 %v1022, 0.5
    %v1027 = vmul.f32 %v1024, 0.5
    %v1028 = vtanh.pop %v1026
    %v1029 = vtanh.pop %v1027
    %v1030 = vmul.f32 %v1028, 0.5
    %v1031 = vmul.f32 %v1029, 0.5
    %v1032 = vadd.f32 %v1030, 0.5
    %v1033 = vadd.f32 %v1031, 0.5
    %v1034 = vlaneseq
    %v1035 = vshrl.u32 %v1034, 7
    %v1036 = vsub.s32 0, %v1035
    %v1037 = vrot.slane %v1032, %v1036
    %v1038 = vlaneseq
    %v1039 = vshrl.u32 %v1038, 7
    %v1040 = vsub.s32 0, %v1039
    %v1041 = vrot.slane %v1033, %v1040
    %v1042 = vmul.f32 %v427, %v1037
    %v1043 = vmul.f32 %v428, %v1041
    %v1044 = vmul.f32 %v429, %v1037
    %v1045 = vmul.f32 %v430, %v1041
    %v1046 = vmul.f32 %v431, %v1037
    %v1047 = vmul.f32 %v432, %v1041
    %v1048 = vmul.f32 %v433, %v1037
    %v1049 = vmul.f32 %v434, %v1041
    %1050 = vst [vmem:[%s4] sm:$0xff] %v1042
    %1051 = vst [vmem:[%s4 + $0x8] sm:$0xff] %v1043
    %1052 = vst [vmem:[%s4 + $0x10] sm:$0xff] %v1044
    %1053 = vst [vmem:[%s4 + $0x18] sm:$0xff] %v1045
    %1054 = vst [vmem:[%s4 + $0x20] sm:$0xff] %v1046
    %1055 = vst [vmem:[%s4 + $0x28] sm:$0xff] %v1047
    %1056 = vst [vmem:[%s4 + $0x30] sm:$0xff] %v1048
    %1057 = vst [vmem:[%s4 + $0x38] sm:$0xff] %v1049
    %v1058 = vlaneseq
    %v1059 = vshrl.u32 %v1058, 7
    %v1060 = vsub.s32 1, %v1059
    %v1061 = vrot.slane %v1032, %v1060
    %v1062 = vlaneseq
    %v1063 = vshrl.u32 %v1062, 7
    %v1064 = vsub.s32 1, %v1063
    %v1065 = vrot.slane %v1033, %v1064
    %v1066 = vmul.f32 %v693, %v1061
    %v1067 = vmul.f32 %v694, %v1065
    %v1068 = vmul.f32 %v695, %v1061
    %v1069 = vmul.f32 %v696, %v1065
    %v1070 = vmul.f32 %v697, %v1061
    %v1071 = vmul.f32 %v698, %v1065
    %v1072 = vmul.f32 %v699, %v1061
    %v1073 = vmul.f32 %v700, %v1065
    %s1074 = scalar_lea.vmem %s4, 64
    %1075 = vst [vmem:[%s1074] sm:$0xff] %v1066
    %1076 = vst [vmem:[%s1074 + $0x8] sm:$0xff] %v1067
    %1077 = vst [vmem:[%s1074 + $0x10] sm:$0xff] %v1068
    %1078 = vst [vmem:[%s1074 + $0x18] sm:$0xff] %v1069
    %1079 = vst [vmem:[%s1074 + $0x20] sm:$0xff] %v1070
    %1080 = vst [vmem:[%s1074 + $0x28] sm:$0xff] %v1071
    %1081 = vst [vmem:[%s1074 + $0x30] sm:$0xff] %v1072
    %1082 = vst [vmem:[%s1074 + $0x38] sm:$0xff] %v1073
    // Predicated region
    $region22: #{forward.1} parent=1 // pred_check
      _
    $region23: #{forward.1} parent=1 // pred_check_branch
      %1084 = sbr.rel (0) target = $region25
    $region24: #{forward.1} parent=1 // pred_region
      _
    $region25: #{forward.1} parent=1 // pred_fallthru
      _
    // Predicated region
    $region26: #{forward.1} parent=1 // pred_check
      _
    $region27: #{forward.1} parent=1 // pred_check_branch
      %1086 = sbr.rel (0) target = $region29
    $region28: #{forward.1} parent=1 // pred_region
      _
    $region29: #{forward.1} parent=1 // pred_fallthru
      _
    %1087 = vsyncpa [#allocation3], 1

</llo_original>
